<compile_context>
chip_gen: v6e
topology: v6e:2x2x1
jax: 0.10.0
libtpu: 0.0.40
codegen_flags: <defaults>
</compile_context>

<pallas_src>
import functools

import jax
import jax.numpy as jnp
from jax.experimental import pallas as pl
from jax.experimental.pallas import tpu as pltpu

_MIB = 1024 * 1024


def _cdiv(a: int, b: int) -> int:
    return -(-a // b)


def _vmem_working_set_budget() -> int:
    """Per-generation cap on the pipelined working set (2 in + 2 out tiles)."""
    try:
        cap = int(pltpu.get_tpu_info().vmem_capacity_bytes)
    except Exception:
        cap = 64 * _MIB  # query unavailable -> assume smallest (v7x-class)
    if cap <= 64 * _MIB:
        # v7x: 64 MiB per TensorCore; keep the 4-buffer working set well clear.
        return 40 * _MIB
    # v5e / v6e: 128 MiB physical VMEM -> bigger tiles, fewer pipeline steps.
    return 80 * _MIB


def _roll_kernel(x_ref, o_ref, *, d):
    # Kernel view (batch dim squeezed): (seq, TH).
    # torch.roll semantics: out[i, :] = x[(i - d) mod seq, :]
    x = x_ref[...]
    if d == 0:
        o_ref[...] = x
    else:
        # Single XLU sublane rotation; XLU is otherwise idle in this
        # memcpy-class kernel, so the rotate hides under DMA time.
        # TODO(synk): for packed dtypes (bf16/int8) with seq not a multiple of
        # the sublane packing, verify the lowering (pl.lower_as_mlir) and
        # switch to two static sliced stores if the roll lowers to
        # unpack/shuffle chains.
        o_ref[...] = pltpu.roll(x, shift=d, axis=0)


def phase_alignment(x: jax.Array, delay: int,
                    *, vmem_budget_bytes: int | None = None) -> jax.Array:
    """Roll x by `delay` along axis 1 (same semantics as torch.roll dims=1)."""
    b, seq, hidden = x.shape
    d = delay % seq  # normalize negative / oversized delays like torch.roll

    if d == 0:
        # No-op roll: skip the HBM read+write round trip entirely.
        return x

    itemsize = jnp.dtype(x.dtype).itemsize
    if vmem_budget_bytes is None:
        vmem_budget_bytes = _vmem_working_set_budget()

    # Working-set bytes per lane of tile width: 2 input + 2 output buffers,
    # each (seq, th).
    bytes_per_lane_col = 4 * seq * itemsize

    if hidden >= 128 and hidden % 128 == 0:
        if bytes_per_lane_col * 128 > vmem_budget_bytes:
            # Even a single 128-lane, full-seq column blows the VMEM budget
            # (fp32 seq >~ 20K on v7x).  A seq-tiled Pallas roll needs wrap
            # handling; this memcpy-class op is equally HBM-bound under XLA.
            # TODO(synk): seq-tiled Pallas path (two stores / halo read) for
            # extremely long sequences.
            return jnp.roll(x, shift=d, axis=1)

        max_th = (vmem_budget_bytes // bytes_per_lane_col) // 128 * 128
        max_th = min(max_th, hidden)

        # Largest divisor of hidden that is a multiple of 128 and <= max_th.
        best_div = 128
        for k in range(1, hidden // 128 + 1):
            cand = 128 * k
            if cand > max_th:
                break
            if hidden % cand == 0:
                best_div = cand

        if best_div >= min(512, max_th):
            th = best_div        # exact tiling, no ragged block
        else:
            # Divisors collapse to tiny tiles (e.g. hidden/128 prime): keep a
            # big lane-dense tile and accept one ragged (masked) last block.
            th = max_th

        # Ensure enough grid steps to pipeline DMA and feed both v7x
        # TensorCores, without dropping below a 512-lane floor.
        min_steps = 8
        while th > 512 and b * _cdiv(hidden, th) < min_steps:
            new_th = max(512, (th // 2) // 128 * 128)
            if new_th == th:
                break
            th = new_th
    else:
        # Non-128-multiple hidden: only expected for tiny/toy shapes; use the
        # full hidden extent (full array dim is always a legal block shape).
        th = hidden
        padded_lanes = _cdiv(hidden, 128) * 128
        if bytes_per_lane_col * padded_lanes > vmem_budget_bytes:
            return jnp.roll(x, shift=d, axis=1)

    n_h = _cdiv(hidden, th)

    # Scoped VMEM limit: working set (lane/sublane padded, rough) + headroom.
    padded_th = _cdiv(th, 128) * 128
    padded_seq = _cdiv(seq, 8) * 8
    working_set = 4 * padded_seq * padded_th * itemsize
    vmem_limit = min(working_set + 8 * _MIB, 100 * _MIB)

    kernel = functools.partial(_roll_kernel, d=d)

    return pl.pallas_call(
        kernel,
        out_shape=jax.ShapeDtypeStruct((b, seq, hidden), x.dtype),
        grid_spec=pltpu.PrefetchScalarGridSpec(
            num_scalar_prefetch=0,
            grid=(b, n_h),
            in_specs=[
                pl.BlockSpec((pl.Squeezed(), seq, th), lambda i, j: (i, 0, j)),
            ],
            out_specs=pl.BlockSpec((pl.Squeezed(), seq, th),
                                   lambda i, j: (i, 0, j)),
        ),
        compiler_params=pltpu.CompilerParams(
            # Both axes are fully independent -> megacore (v7x) can shard them.
            dimension_semantics=("parallel", "parallel"),
            vmem_limit_bytes=int(vmem_limit),
        ),
    )(x)


if __name__ == "__main__":
    key = jax.random.PRNGKey(0)

    # Toy shape matching the module's expected (batch, seq, hidden) layout.
    batch, seq, hidden = 2, 8, 32
    delay = 3
    x = jax.random.normal(key, (batch, seq, hidden), dtype=jnp.float32)

    out = jax.block_until_ready(phase_alignment(x, delay))
    ref = jnp.roll(x, shift=delay, axis=1)
    assert out.shape == x.shape and out.dtype == x.dtype
    assert jnp.array_equal(out, ref), "mismatch vs reference roll (toy shape)"

    # Negative delay (torch.roll supports it).
    out_neg = jax.block_until_ready(phase_alignment(x, -2))
    assert jnp.array_equal(out_neg, jnp.roll(x, shift=-2, axis=1)), \
        "mismatch vs reference roll (negative delay)"

    # Zero-effect roll (delay a multiple of seq) -> early-return fast path.
    out_zero = jax.block_until_ready(phase_alignment(x, seq))
    assert jnp.array_equal(out_zero, x), "mismatch on zero-roll fast path"

    # Lane-dense path: hidden is a multiple of 128 -> tiled, unmasked stores.
    x2 = jax.random.normal(jax.random.PRNGKey(0), (2, 16, 256),
                           dtype=jnp.float32)
    out2 = jax.block_until_ready(phase_alignment(x2, 5))
    assert jnp.array_equal(out2, jnp.roll(x2, shift=5, axis=1)), \
        "mismatch vs reference roll (lane-dense shape)"

    print("KERNEL_OK")
</pallas_src>

<mosaic_0001>
module attributes {stable_mosaic.version = 11 : i64} {
  func.func @_roll_kernel(%arg0: i32, %arg1: i32, %arg2: memref<1x8x32xf32, #tpu.memory_space<vmem>>, %arg3: memref<1x8x32xf32, #tpu.memory_space<vmem>>) attributes {dimension_semantics = [#tpu.dimension_semantics<parallel>, #tpu.dimension_semantics<parallel>], iteration_bounds = array<i64: 2, 1>, scalar_prefetch = 0 : i64, scratch_operands = 0 : i64, tpu.core_type = #tpu.core_type<tc>, window_params = [{transform_indices = @transform_0, window_bounds = array<i64: 1, 8, 32>}, {transform_indices = @transform_1, window_bounds = array<i64: 1, 8, 32>}]} {
    %c0 = arith.constant 0 : index
    %c0_0 = arith.constant 0 : index
    %c0_1 = arith.constant 0 : index
    %0 = vector.load %arg2[%c0, %c0_0, %c0_1] : memref<1x8x32xf32, #tpu.memory_space<vmem>>, vector<1x8x32xf32>
    %1 = vector.shape_cast %0 : vector<1x8x32xf32> to vector<8x32xf32>
    %c3_i32 = arith.constant 3 : i32
    %2 = tpu.dynamic_rotate %1 by %c3_i32 dim 0 : vector<8x32xf32>, i32 -> vector<8x32xf32>
    %c0_2 = arith.constant 0 : index
    %c0_3 = arith.constant 0 : index
    %c0_4 = arith.constant 0 : index
    %3 = vector.load %arg3[%c0_2, %c0_3, %c0_4] : memref<1x8x32xf32, #tpu.memory_space<vmem>>, vector<1x8x32xf32>
    %4 = vector.shape_cast %3 : vector<1x8x32xf32> to vector<8x32xf32>
    %5 = vector.shape_cast %2 : vector<8x32xf32> to vector<1x8x32xf32>
    tpu.vector_store %arg3[%c0_2, %c0_3, %c0_4], %5 {strides = array<i32>} : memref<1x8x32xf32, #tpu.memory_space<vmem>>, vector<1x8x32xf32>,
    return
  }
  func.func @transform_0(%arg0: i32, %arg1: i32) -> (i32, i32, i32) {
    %c0_i32 = arith.constant 0 : i32
    %c0_i32_0 = arith.constant 0 : i32
    return %arg0, %c0_i32, %arg1 : i32, i32, i32
  }
  func.func @transform_1(%arg0: i32, %arg1: i32) -> (i32, i32, i32) {
    %c0_i32 = arith.constant 0 : i32
    %c0_i32_0 = arith.constant 0 : i32
    return %arg0, %c0_i32, %arg1 : i32, i32, i32
  }
}

</mosaic_0001>

<llo_original>
// kernel: tpu_custom_call.1
$region0: #{tpu_custom_call.1}
  #allocation0 [shape = 'u32[]', space=smem, size = 0x4, offset = 0x4, fixed_abs, tag = 'smem constant byte address 0x4 - core index']
  #allocation1 [shape = 'u32[144,128]{1,0:T(1,128)}', space=vmem, size = 0x12000, scoped, tag = 'internal scratch']
  %s0 = inlined_call_operand.hbm [shape: f32[2,8,32], index: 0, kind: input, shape index: {}]
  %s1 = inlined_call_operand.hbm [shape: f32[2,8,32], index: 1, kind: output, shape index: {}]
  %s2 = sld [smem:[#allocation0]]
  $region41: #{tpu_custom_call.1} parent=0
    _
  %s4 = ssub.s32 1, %s2
  %s5 = scalar_select 0, %s4, %s2
  $region1: #{tpu_custom_call.1} parent=0
    #allocation2 [shape = 'u8[8192]{0}', space=vmem, size = 0x2000, scoped, tag = 'input window, operand 0']
    #allocation3 [shape = 's32[2]{0}', space=sflag, size = 0x8, scoped, tag = 'scoped memory for tpu_custom_call.1']
    #allocation4 [shape = 's32[2]{0}', space=sflag, size = 0x8, scoped, tag = 'scoped memory for tpu_custom_call.1']
    #allocation5 [shape = 'u8[8192]{0}', space=vmem, size = 0x2000, scoped, tag = 'output window, operand 0']
    %6 = vsyncpa [#allocation3], 0
    %s7 = scalar_lea.sflag [#allocation3], 1
    %8 = vsyncpa %s7, 0
    %9 = vsyncpa [#allocation4], 0
    %s10 = scalar_lea.sflag [#allocation4], 1
    %11 = vsyncpa %s10, 0
    loop: start=0, step=1, limit=4
    $region2: #{tpu_custom_call.1} parent=1 // loop_pre_header
      _
    $region3: #{tpu_custom_call.1} parent=1 // loop_header
      %s13 = sphi 0, %s17
      %p14 = scmp.ge.s32.totalorder %s13, 4
      %s20 = sphi 0, %s32
      %s21 = sphi 0, %s28
      %s22 = sphi 0, %s20
      %s23 = sphi 0, %s21
      %s24 = sphi 0, %s22
      %s25 = sphi 0, %s23
      %s37 = sphi 0, %s39
      %s40 = sphi 0, %s37
      %s41 = sphi 0, %s40
      %s57 = sphi 0, %s41
      %s65 = sphi 0, %s67
      %s68 = sphi 0, %s65
      %s69 = sphi 0, %s68
      %s85 = sphi 0, %s69
    $region4: #{tpu_custom_call.1} parent=1 // loop_header_branch
      %16 = sbr.rel (%p14) target = $region8
    $region5: #{tpu_custom_call.1} parent=1 // loop_body
      %s18 = ssub.s32 %s13, 1
      %s19 = ssub.s32 %s13, 2
      %s26 = sadd.s32 1, %s21
      %p27 = scmp.ge.s32.totalorder %s26, 1
      %s28 = scalar_select %p27, 0, %s26
      %s29 = sadd.s32 1, %s20
      %s30 = scalar_select %p27, %s29, %s20
      %p31 = scmp.ge.s32.totalorder %s30, 2
      %s32 = scalar_select %p31, 0, %s30
      %s33 = ssub.s32 %s20, %s32
      %s34 = ssub.s32 %s21, %s28
      %s35 = sor.u32 %s33, %s34
      %p36 = scmp.eq.s32.totalorder %s35, 0
      %s38 = sadd.s32 %s37, 1
      %s39 = scalar_select %p36, %s37, %s38
      %p42 = pneg %p36
      %p43 = scmp.eq.s32.totalorder %s13, 1
      %p44 = por %p42, %p43
      %p45 = scmp.ne.s32.totalorder %s37, %s40
      %p46 = scmp.eq.s32.totalorder %s13, 0
      %p47 = por %p45, %p46
      %p48 = scmp.ne.s32.totalorder %s37, %s40
      %p49 = scmp.eq.s32.totalorder %s18, 1
      %p50 = por %p48, %p49
      %p51 = scmp.ne.s32.totalorder %s40, %s41
      %p52 = scmp.eq.s32.totalorder %s18, 0
      %p53 = por %p51, %p52
      %p54 = scmp.ne.s32.totalorder %s40, %s41
      %p55 = scmp.eq.s32.totalorder %s19, 1
      %p56 = por %p54, %p55
      %p58 = scmp.ne.s32.totalorder %s41, %s57
      %p59 = scmp.eq.s32.totalorder %s19, 0
      %p60 = por %p58, %p59
      %s61 = ssub.s32 %s20, %s32
      %s62 = ssub.s32 %s21, %s28
      %s63 = sor.u32 %s61, %s62
      %p64 = scmp.eq.s32.totalorder %s63, 0
      %s66 = sadd.s32 %s65, 1
      %s67 = scalar_select %p64, %s65, %s66
      %p70 = pneg %p64
      %p71 = scmp.eq.s32.totalorder %s13, 1
      %p72 = por %p70, %p71
      %p73 = scmp.ne.s32.totalorder %s65, %s68
      %p74 = scmp.eq.s32.totalorder %s13, 0
      %p75 = por %p73, %p74
      %p76 = scmp.ne.s32.totalorder %s65, %s68
      %p77 = scmp.eq.s32.totalorder %s18, 1
      %p78 = por %p76, %p77
      %p79 = scmp.ne.s32.totalorder %s68, %s69
      %p80 = scmp.eq.s32.totalorder %s18, 0
      %p81 = por %p79, %p80
      %p82 = scmp.ne.s32.totalorder %s68, %s69
      %p83 = scmp.eq.s32.totalorder %s19, 1
      %p84 = por %p82, %p83
      %p86 = scmp.ne.s32.totalorder %s69, %s85
      %p87 = scmp.eq.s32.totalorder %s19, 0
      %p88 = por %p86, %p87
      %p89 = scmp.le.s32.totalorder 1, %s13
      %p90 = scmp.lt.s32.totalorder %s13, 3
      %p91 = pnand %p89, %p90
      %p92 = pneg %p91
      // Predicated region
      $region9: #{tpu_custom_call.1} parent=5 // pred_check
        _
      $region10: #{tpu_custom_call.1} parent=5 // pred_check_branch
        %94 = sbr.rel (%p91) target = $region12
      $region11: #{tpu_custom_call.1} parent=5 // pred_region
        %s95 = ssub.s32 %s13, 1
      $region12: #{tpu_custom_call.1} parent=5 // pred_fallthru
        _
      %p96 = scmp.lt.s32.totalorder %s13, 2
      // Predicated region
      $region13: #{tpu_custom_call.1} parent=5 // pred_check
        %p97 = pneg %p96
      $region14: #{tpu_custom_call.1} parent=5 // pred_check_branch
        %99 = sbr.rel (%p97) target = $region16
      $region15: #{tpu_custom_call.1} parent=5 // pred_region
        // Predicated region
        $region17: #{tpu_custom_call.1} parent=15 // pred_check
          %p100 = pneg %p47
        $region18: #{tpu_custom_call.1} parent=15 // pred_check_branch
          %102 = sbr.rel (%p100) target = $region20
        $region19: #{tpu_custom_call.1} parent=15 // pred_region
          %s103 = sand.u32 %s37, 1
          %s104 = scalar_lea.sflag [#allocation3], %s103
          %s105 = sand.u32 %s37, 1
          %s106 = smul.addr %s105, 8
          %s107 = scalar_lea.vmem [#allocation2], %s106
          %s109 = ssub.s32 128, 128
          %110 = vsyncadd %s104, %s109
          %s111 = sadd.s32 %s21, %s20
          %s112 = smul.addr %s111, 128
          %s113 = scalar_lea.hbm %s0, %s112
          %s115 = sshll.u32 %s107, 4
          %s116 = int_to_ptr.vmem [resolvable:$true] %s115
          %118 = dma.hbm_to_vmem [thread:$0]  %s113, 128, %s116, %s104
        $region20: #{tpu_custom_call.1} parent=15 // pred_fallthru
          _
      $region16: #{tpu_custom_call.1} parent=5 // pred_fallthru
        _
      %p119 = scmp.le.s32.totalorder 1, %s13
      %p120 = scmp.lt.s32.totalorder %s13, 3
      %p121 = pnand %p119, %p120
      %p122 = pneg %p121
      // Predicated region
      $region21: #{tpu_custom_call.1} parent=5 // pred_check
        _
      $region22: #{tpu_custom_call.1} parent=5 // pred_check_branch
        %124 = sbr.rel (%p121) target = $region24
      $region23: #{tpu_custom_call.1} parent=5 // pred_region
        %s125 = ssub.s32 %s13, 1
        %s126 = sand.u32 %s40, 1
        %s127 = scalar_lea.sflag [#allocation3], %s126
        %s128 = sand.u32 %s40, 1
        %s129 = smul.addr %s128, 8
        %s130 = scalar_lea.vmem [#allocation2], %s129
        // Predicated region
        $region25: #{tpu_custom_call.1} parent=23 // pred_check
          %p131 = pneg %p53
        $region26: #{tpu_custom_call.1} parent=23 // pred_check_branch
          %133 = sbr.rel (%p131) target = $region28
        $region27: #{tpu_custom_call.1} parent=23 // pred_region
          %134 = dma.done %s127, 128
        $region28: #{tpu_custom_call.1} parent=23 // pred_fallthru
          _
        %s135 = sand.u32 %s40, 1
        %s136 = scalar_lea.sflag [#allocation3], %s135
        %s137 = sand.u32 %s40, 1
        %s138 = smul.addr %s137, 8
        %s139 = scalar_lea.vmem [#allocation2], %s138
        %p140 = pneg %p53
        %p141 = pneg %p50
        %p142 = pneg %p81
        %p143 = pneg %p78
        %s144 = sand.u32 %s68, 1
        %s145 = scalar_lea.sflag [#allocation4], %s144
        %s146 = sand.u32 %s68, 1
        %s147 = smul.addr %s146, 8
        %s148 = scalar_lea.vmem [#allocation5], %s147
        %v149 = vld [vmem:[%s130] sm:$0xff]
        %v150 = vrot.slane %v149, 5
        %vm151 = vcmask 261120
        %152 = vst.msk [vmem:[%s148] sm:$0xff] %vm151, %v150
        %s153 = sand.u32 %s68, 1
        %s154 = scalar_lea.sflag [#allocation4], %s153
        %s155 = sand.u32 %s68, 1
        %s156 = smul.addr %s155, 8
        %s157 = scalar_lea.vmem [#allocation5], %s156
        // Predicated region
        $region29: #{tpu_custom_call.1} parent=23 // pred_check
          %p158 = pneg %p78
        $region30: #{tpu_custom_call.1} parent=23 // pred_check_branch
          %160 = sbr.rel (%p158) target = $region32
        $region31: #{tpu_custom_call.1} parent=23 // pred_region
          %s162 = ssub.s32 128, 128
          %163 = vsyncadd %s154, %s162
          %s164 = sadd.s32 %s23, %s22
          %s165 = smul.addr %s164, 128
          %s166 = scalar_lea.hbm %s1, %s165
          %s168 = sshll.u32 %s157, 4
          %s169 = int_to_ptr.vmem [resolvable:$true] %s168
          %171 = dma.vmem_to_hbm [thread:$0]  %s169, 128, %s166, %s154
        $region32: #{tpu_custom_call.1} parent=23 // pred_fallthru
          _
      $region24: #{tpu_custom_call.1} parent=5 // pred_fallthru
        _
      %p172 = scmp.le.s32.totalorder 2, %s13
      // Predicated region
      $region33: #{tpu_custom_call.1} parent=5 // pred_check
        %p173 = pneg %p172
      $region34: #{tpu_custom_call.1} parent=5 // pred_check_branch
        %175 = sbr.rel (%p173) target = $region36
      $region35: #{tpu_custom_call.1} parent=5 // pred_region
        %s176 = ssub.s32 %s13, 2
        // Predicated region
        $region37: #{tpu_custom_call.1} parent=35 // pred_check
          %p177 = pneg %p84
        $region38: #{tpu_custom_call.1} parent=35 // pred_check_branch
          %179 = sbr.rel (%p177) target = $region40
        $region39: #{tpu_custom_call.1} parent=35 // pred_region
          %s180 = sand.u32 %s69, 1
          %s181 = scalar_lea.sflag [#allocation4], %s180
          %s182 = sand.u32 %s69, 1
          %s183 = smul.addr %s182, 8
          %s184 = scalar_lea.vmem [#allocation5], %s183
          %185 = dma.done %s181, 128
        $region40: #{tpu_custom_call.1} parent=35 // pred_fallthru
          _
      $region36: #{tpu_custom_call.1} parent=5 // pred_fallthru
        _
    $region6: #{tpu_custom_call.1} parent=1 // loop_footer
      %s17 = sadd.s32 1, %s13
    $region7: #{tpu_custom_call.1} parent=1 // loop_footer_branch
      %12 = sbr.rel target = $region3
    $region8: #{tpu_custom_call.1} parent=1 // loop_exit
      _
    %186 = vsyncpa [#allocation3], 1
    %s187 = scalar_lea.sflag [#allocation3], 1
    %188 = vsyncpa %s187, 1
    %189 = vsyncpa [#allocation4], 1
    %s190 = scalar_lea.sflag [#allocation4], 1
    %191 = vsyncpa %s190, 1

</llo_original>
